<compile_context>
chip_gen: v7x
topology: tpu7x:2x2x1
jax: 0.10.0
libtpu: 0.0.40
codegen_flags: <defaults>
</compile_context>

<pallas_src>
import functools
import math

import jax
import jax.numpy as jnp
from jax import lax
from jax.experimental import pallas as pl
from jax.experimental.pallas import tpu as pltpu


def _round_up(x, m):
    return ((x + m - 1) // m) * m


def glove_loss_kernel(c_idx_ref, p_idx_ref,          # scalar prefetch (SMEM)
                      labels_ref,                    # (1, 1, Bt) f32 VMEM
                      c_tab_ref, p_tab_ref,          # (V, 1, W) f32 HBM
                      out_ref,                       # (1, 1, Bt) f32 VMEM
                      c_buf, p_buf, sems,            # scratch
                      *, log_x_max, alpha, b_true):
    blk = pl.program_id(0)
    bt = labels_ref.shape[2]
    base = blk * bt

    # ---- row gather: issue all DMAs for this block, then wait on all ----
    @pl.loop(0, bt)
    def _issue(j):
        c_row = c_idx_ref[base + j]
        p_row = p_idx_ref[base + j]
        pltpu.make_async_copy(c_tab_ref.at[c_row], c_buf.at[j],
                              sems.at[0, j]).start()
        pltpu.make_async_copy(p_tab_ref.at[p_row], p_buf.at[j],
                              sems.at[1, j]).start()

    # TODO(synk): overlap block i+1's gather DMAs with block i's compute
    # (manual double-buffering of c_buf/p_buf) for large batches.
    @pl.loop(0, bt)
    def _wait(j):
        pltpu.make_async_copy(c_tab_ref.at[0], c_buf.at[j], sems.at[0, j]).wait()
        pltpu.make_async_copy(p_tab_ref.at[0], p_buf.at[j], sems.at[1, j]).wait()

    c = c_buf[...].reshape(bt, -1)                   # (Bt, W)
    p = p_buf[...].reshape(bt, -1)                   # (Bt, W)

    # Fused score: lane-sum gives dot(c_emb, p_emb) + c_bias + p_bias directly
    # (bias / ones columns are baked into the tables, padding lanes are zero).
    score = jnp.sum(c * p, axis=1)[None, :]          # (1, Bt) lane-dense

    labels = labels_ref[0]                           # (1, Bt) lane-dense
    log_labels = jnp.log(labels)
    # weight = min((labels / x_max) ** alpha, 1), reusing log(labels).
    weight = jnp.minimum(jnp.exp(alpha * (log_labels - log_x_max)), 1.0)
    err = score - log_labels
    contrib = weight * err * err                     # (1, Bt)

    # Mask out padded batch rows so the wrapper-side sum / B is exact.
    gidx = base + lax.broadcasted_iota(jnp.int32, (1, bt), 1)
    contrib = jnp.where(gidx < b_true, contrib, 0.0)

    out_ref[...] = contrib.reshape(1, 1, bt)


def glove_loss(c_data, p_data, labels, c_emb, c_bias, p_emb, p_bias,
               *, x_max, alpha, block_b=256):
    b = c_data.shape[0]
    v, d = c_emb.shape

    # --- fused, lane-padded tables (built once in the wrapper) ---
    width = _round_up(d + 2, 128)
    ones = jnp.ones((v, 1), jnp.float32)
    zpad = jnp.zeros((v, width - (d + 2)), jnp.float32)
    c_tab = jnp.concatenate(
        [c_emb.astype(jnp.float32), c_bias.astype(jnp.float32), ones, zpad],
        axis=1).reshape(v, 1, width)
    p_tab = jnp.concatenate(
        [p_emb.astype(jnp.float32), ones, p_bias.astype(jnp.float32), zpad],
        axis=1).reshape(v, 1, width)

    # --- batch blocking / padding ---
    bt = min(block_b, _round_up(b, 8))
    b_pad = _round_up(b, bt)
    nblk = b_pad // bt

    c_idx = jnp.pad(c_data.reshape(-1).astype(jnp.int32), (0, b_pad - b))
    p_idx = jnp.pad(p_data.reshape(-1).astype(jnp.int32), (0, b_pad - b))
    labels_pad = jnp.pad(labels.reshape(-1).astype(jnp.float32),
                         (0, b_pad - b), constant_values=1.0)
    labels3d = labels_pad.reshape(nblk, 1, bt)

    kernel = functools.partial(glove_loss_kernel,
                               log_x_max=math.log(float(x_max)),
                               alpha=float(alpha),
                               b_true=b)

    contribs = pl.pallas_call(
        kernel,
        out_shape=jax.ShapeDtypeStruct((nblk, 1, bt), jnp.float32),
        grid_spec=pltpu.PrefetchScalarGridSpec(
            num_scalar_prefetch=2,
            grid=(nblk,),
            in_specs=[
                pl.BlockSpec((1, 1, bt), lambda i, cref, pref: (i, 0, 0)),
                pl.BlockSpec(memory_space=pl.ANY),   # c table stays in HBM
                pl.BlockSpec(memory_space=pl.ANY),   # p table stays in HBM
            ],
            out_specs=pl.BlockSpec((1, 1, bt), lambda i, cref, pref: (i, 0, 0)),
            scratch_shapes=[
                pltpu.VMEM((bt, 1, width), jnp.float32),   # gathered c rows
                pltpu.VMEM((bt, 1, width), jnp.float32),   # gathered p rows
                pltpu.SemaphoreType.DMA((2, bt)),
            ],
        ),
        compiler_params=pltpu.CompilerParams(
            dimension_semantics=("parallel",)),
    )(c_idx, p_idx, labels3d, c_tab, p_tab)

    return jnp.sum(contribs) / b


def glove_loss_ref(c_data, p_data, labels, c_emb, c_bias, p_emb, p_bias,
                   *, x_max, alpha):
    ce = c_emb[c_data[:, 0]]
    pe = p_emb[p_data[:, 0]]
    cb = c_bias[c_data[:, 0]]
    pb = p_bias[p_data[:, 0]]
    score = jnp.sum(ce * pe, axis=1, keepdims=True) + cb + pb
    weight = jnp.minimum(jnp.power(labels / x_max, alpha), 1.0)
    return jnp.mean(weight * jnp.square(score - jnp.log(labels)))


if __name__ == "__main__":
    VOCAB = 64
    DIM = 32
    BATCH = 8
    X_MAX = 100.0
    ALPHA = 0.75

    key = jax.random.PRNGKey(0)
    k1, k2, k3, k4, k5, k6, k7 = jax.random.split(key, 7)

    # nn.Embedding default init: N(0, 1)
    c_emb = jax.random.normal(k1, (VOCAB, DIM), dtype=jnp.float32)
    c_bias = jax.random.normal(k2, (VOCAB, 1), dtype=jnp.float32)
    p_emb = jax.random.normal(k3, (VOCAB, DIM), dtype=jnp.float32)
    p_bias = jax.random.normal(k4, (VOCAB, 1), dtype=jnp.float32)

    c_data = jax.random.randint(k5, (BATCH, 1), 0, VOCAB, dtype=jnp.int32)
    p_data = jax.random.randint(k6, (BATCH, 1), 0, VOCAB, dtype=jnp.int32)
    # positive co-occurrence counts (labels must be > 0 for log)
    labels = jax.random.uniform(k7, (BATCH, 1), dtype=jnp.float32,
                                minval=1.0, maxval=150.0)

    loss = glove_loss(c_data, p_data, labels, c_emb, c_bias, p_emb, p_bias,
                      x_max=X_MAX, alpha=ALPHA)
    loss = jax.block_until_ready(loss)

    ref = glove_loss_ref(c_data, p_data, labels, c_emb, c_bias, p_emb, p_bias,
                         x_max=X_MAX, alpha=ALPHA)
    assert jnp.allclose(loss, ref, rtol=1e-5, atol=1e-5), (loss, ref)

    print("KERNEL_OK")
</pallas_src>

<mosaic_0001>
module attributes {stable_mosaic.version = 11 : i64} {
  func.func @glove_loss_kernel(%arg0: i32, %arg1: memref<8xi32, #tpu.memory_space<smem>>, %arg2: memref<8xi32, #tpu.memory_space<smem>>, %arg3: memref<1x1x8xf32, #tpu.memory_space<vmem>>, %arg4: memref<64x1x128xf32, #tpu.memory_space<any>>, %arg5: memref<64x1x128xf32, #tpu.memory_space<any>>, %arg6: memref<1x1x8xf32, #tpu.memory_space<vmem>>, %arg7: memref<8x1x128xf32, #tpu.memory_space<vmem>>, %arg8: memref<8x1x128xf32, #tpu.memory_space<vmem>>, %arg9: memref<2x8x!tpu.dma_semaphore, #tpu.memory_space<semaphore_mem>>) attributes {dimension_semantics = [#tpu.dimension_semantics<parallel>], iteration_bounds = array<i64: 1>, scalar_prefetch = 2 : i64, scratch_operands = 3 : i64, tpu.core_type = #tpu.core_type<tc>, window_params = [{transform_indices = @transform_0, window_bounds = array<i64: 1, 1, 8>}, {}, {}, {transform_indices = @transform_3, window_bounds = array<i64: 1, 1, 8>}]} {
    %c8_i32 = arith.constant 8 : i32
    %0 = arith.muli %arg0, %c8_i32 : i32
    %c0_i32 = arith.constant 0 : i32
    %c8_i32_0 = arith.constant 8 : i32
    %1 = arith.addi %c0_i32, %c8_i32_0 : i32
    %c1_i32 = arith.constant 1 : i32
    scf.for %arg10 = %c0_i32 to %1 step %c1_i32  : i32 {
      %c1_i32_22 = arith.constant 1 : i32
      %32 = arith.muli %arg10, %c1_i32_22 : i32
      %c0_i32_23 = arith.constant 0 : i32
      %33 = arith.addi %c0_i32_23, %32 : i32
      %34 = arith.addi %0, %33 : i32
      %35 = arith.index_cast %34 : i32 to index
      %36 = memref.load %arg1[%35] : memref<8xi32, #tpu.memory_space<smem>>
      %37 = arith.addi %0, %33 : i32
      %38 = arith.index_cast %37 : i32 to index
      %39 = memref.load %arg2[%38] : memref<8xi32, #tpu.memory_space<smem>>
      %c0_i32_24 = arith.constant 0 : i32
      %c0_i32_25 = arith.constant 0 : i32
      %c0_i32_26 = arith.constant 0 : i32
      %40 = tpu.memref_slice %arg4[%36, %c0_i32_25, %c0_i32_26] : memref<64x1x128xf32, #tpu.memory_space<any>> -> memref<1x1x128xf32, #tpu.memory_space<any>>
      %41 = tpu.memref_squeeze %40 : memref<1x1x128xf32, #tpu.memory_space<any>> -> memref<1x128xf32, #tpu.memory_space<any>>
      %c0_i32_27 = arith.constant 0 : i32
      %c0_i32_28 = arith.constant 0 : i32
      %42 = tpu.memref_slice %arg7[%33, %c0_i32_27, %c0_i32_28] : memref<8x1x128xf32, #tpu.memory_space<vmem>> -> memref<1x1x128xf32, #tpu.memory_space<vmem>>
      %43 = tpu.memref_squeeze %42 : memref<1x1x128xf32, #tpu.memory_space<vmem>> -> memref<1x128xf32, #tpu.memory_space<vmem>>
      %44 = tpu.memref_slice %arg9[%c0_i32_24, %33] : memref<2x8x!tpu.dma_semaphore, #tpu.memory_space<semaphore_mem>> -> memref<1x1x!tpu.dma_semaphore, #tpu.memory_space<semaphore_mem>>
      %45 = tpu.memref_squeeze %44 : memref<1x1x!tpu.dma_semaphore, #tpu.memory_space<semaphore_mem>> -> memref<!tpu.dma_semaphore, #tpu.memory_space<semaphore_mem>>
      tpu.enqueue_dma source(%41 : memref<1x128xf32, #tpu.memory_space<any>>) target(%43 : memref<1x128xf32, #tpu.memory_space<vmem>>) target_semaphore(%45 : memref<!tpu.dma_semaphore, #tpu.memory_space<semaphore_mem>>)
      %c1_i32_29 = arith.constant 1 : i32
      %c0_i32_30 = arith.constant 0 : i32
      %c0_i32_31 = arith.constant 0 : i32
      %46 = tpu.memref_slice %arg5[%39, %c0_i32_30, %c0_i32_31] : memref<64x1x128xf32, #tpu.memory_space<any>> -> memref<1x1x128xf32, #tpu.memory_space<any>>
      %47 = tpu.memref_squeeze %46 : memref<1x1x128xf32, #tpu.memory_space<any>> -> memref<1x128xf32, #tpu.memory_space<any>>
      %c0_i32_32 = arith.constant 0 : i32
      %c0_i32_33 = arith.constant 0 : i32
      %48 = tpu.memref_slice %arg8[%33, %c0_i32_32, %c0_i32_33] : memref<8x1x128xf32, #tpu.memory_space<vmem>> -> memref<1x1x128xf32, #tpu.memory_space<vmem>>
      %49 = tpu.memref_squeeze %48 : memref<1x1x128xf32, #tpu.memory_space<vmem>> -> memref<1x128xf32, #tpu.memory_space<vmem>>
      %50 = tpu.memref_slice %arg9[%c1_i32_29, %33] : memref<2x8x!tpu.dma_semaphore, #tpu.memory_space<semaphore_mem>> -> memref<1x1x!tpu.dma_semaphore, #tpu.memory_space<semaphore_mem>>
      %51 = tpu.memref_squeeze %50 : memref<1x1x!tpu.dma_semaphore, #tpu.memory_space<semaphore_mem>> -> memref<!tpu.dma_semaphore, #tpu.memory_space<semaphore_mem>>
      tpu.enqueue_dma source(%47 : memref<1x128xf32, #tpu.memory_space<any>>) target(%49 : memref<1x128xf32, #tpu.memory_space<vmem>>) target_semaphore(%51 : memref<!tpu.dma_semaphore, #tpu.memory_space<semaphore_mem>>)
    }
    %c8_i32_1 = arith.constant 8 : i32
    %c0_i32_2 = arith.constant 0 : i32
    %c8_i32_3 = arith.constant 8 : i32
    %2 = arith.addi %c0_i32_2, %c8_i32_3 : i32
    %c1_i32_4 = arith.constant 1 : i32
    scf.for %arg10 = %c0_i32_2 to %2 step %c1_i32_4  : i32 {
      %c1_i32_22 = arith.constant 1 : i32
      %32 = arith.muli %arg10, %c1_i32_22 : i32
      %c0_i32_23 = arith.constant 0 : i32
      %33 = arith.addi %c0_i32_23, %32 : i32
      %c0_i32_24 = arith.constant 0 : i32
      %c0_i32_25 = arith.constant 0 : i32
      %c0_i32_26 = arith.constant 0 : i32
      %c0_i32_27 = arith.constant 0 : i32
      %34 = tpu.memref_slice %arg4[%c0_i32_24, %c0_i32_26, %c0_i32_27] : memref<64x1x128xf32, #tpu.memory_space<any>> -> memref<1x1x128xf32, #tpu.memory_space<any>>
      %35 = tpu.memref_squeeze %34 : memref<1x1x128xf32, #tpu.memory_space<any>> -> memref<1x128xf32, #tpu.memory_space<any>>
      %c0_i32_28 = arith.constant 0 : i32
      %c0_i32_29 = arith.constant 0 : i32
      %36 = tpu.memref_slice %arg7[%33, %c0_i32_28, %c0_i32_29] : memref<8x1x128xf32, #tpu.memory_space<vmem>> -> memref<1x1x128xf32, #tpu.memory_space<vmem>>
      %37 = tpu.memref_squeeze %36 : memref<1x1x128xf32, #tpu.memory_space<vmem>> -> memref<1x128xf32, #tpu.memory_space<vmem>>
      %38 = tpu.memref_slice %arg9[%c0_i32_25, %33] : memref<2x8x!tpu.dma_semaphore, #tpu.memory_space<semaphore_mem>> -> memref<1x1x!tpu.dma_semaphore, #tpu.memory_space<semaphore_mem>>
      %39 = tpu.memref_squeeze %38 : memref<1x1x!tpu.dma_semaphore, #tpu.memory_space<semaphore_mem>> -> memref<!tpu.dma_semaphore, #tpu.memory_space<semaphore_mem>>
      tpu.wait_dma2 semaphore(%39 : memref<!tpu.dma_semaphore, #tpu.memory_space<semaphore_mem>>) src(%35 : memref<1x128xf32, #tpu.memory_space<any>>) dst(%37 : memref<1x128xf32, #tpu.memory_space<vmem>>)
      %c0_i32_30 = arith.constant 0 : i32
      %c1_i32_31 = arith.constant 1 : i32
      %c0_i32_32 = arith.constant 0 : i32
      %c0_i32_33 = arith.constant 0 : i32
      %40 = tpu.memref_slice %arg5[%c0_i32_30, %c0_i32_32, %c0_i32_33] : memref<64x1x128xf32, #tpu.memory_space<any>> -> memref<1x1x128xf32, #tpu.memory_space<any>>
      %41 = tpu.memref_squeeze %40 : memref<1x1x128xf32, #tpu.memory_space<any>> -> memref<1x128xf32, #tpu.memory_space<any>>
      %c0_i32_34 = arith.constant 0 : i32
      %c0_i32_35 = arith.constant 0 : i32
      %42 = tpu.memref_slice %arg8[%33, %c0_i32_34, %c0_i32_35] : memref<8x1x128xf32, #tpu.memory_space<vmem>> -> memref<1x1x128xf32, #tpu.memory_space<vmem>>
      %43 = tpu.memref_squeeze %42 : memref<1x1x128xf32, #tpu.memory_space<vmem>> -> memref<1x128xf32, #tpu.memory_space<vmem>>
      %44 = tpu.memref_slice %arg9[%c1_i32_31, %33] : memref<2x8x!tpu.dma_semaphore, #tpu.memory_space<semaphore_mem>> -> memref<1x1x!tpu.dma_semaphore, #tpu.memory_space<semaphore_mem>>
      %45 = tpu.memref_squeeze %44 : memref<1x1x!tpu.dma_semaphore, #tpu.memory_space<semaphore_mem>> -> memref<!tpu.dma_semaphore, #tpu.memory_space<semaphore_mem>>
      tpu.wait_dma2 semaphore(%45 : memref<!tpu.dma_semaphore, #tpu.memory_space<semaphore_mem>>) src(%41 : memref<1x128xf32, #tpu.memory_space<any>>) dst(%43 : memref<1x128xf32, #tpu.memory_space<vmem>>)
    }
    %c8_i32_5 = arith.constant 8 : i32
    %c0 = arith.constant 0 : index
    %c0_6 = arith.constant 0 : index
    %c0_7 = arith.constant 0 : index
    %3 = vector.load %arg7[%c0, %c0_6, %c0_7] : memref<8x1x128xf32, #tpu.memory_space<vmem>>, vector<8x1x128xf32>
    %4 = vector.shape_cast %3 : vector<8x1x128xf32> to vector<8x128xf32>
    %c0_8 = arith.constant 0 : index
    %c0_9 = arith.constant 0 : index
    %c0_10 = arith.constant 0 : index
    %5 = vector.load %arg8[%c0_8, %c0_9, %c0_10] : memref<8x1x128xf32, #tpu.memory_space<vmem>>, vector<8x1x128xf32>
    %6 = vector.shape_cast %5 : vector<8x1x128xf32> to vector<8x128xf32>
    %7 = arith.mulf %4, %6 : vector<8x128xf32>
    %cst = arith.constant dense<0.000000e+00> : vector<8xf32>
    %8 = vector.multi_reduction <add>, %7, %cst [1] : vector<8x128xf32> to vector<8xf32>
    %9 = vector.shape_cast %8 : vector<8xf32> to vector<1x8xf32>
    %c0_11 = arith.constant 0 : index
    %c0_12 = arith.constant 0 : index
    %c0_13 = arith.constant 0 : index
    %10 = vector.load %arg3[%c0_11, %c0_12, %c0_13] : memref<1x1x8xf32, #tpu.memory_space<vmem>>, vector<1x1x8xf32>
    %11 = vector.shape_cast %10 : vector<1x1x8xf32> to vector<1x8xf32>
    %12 = math.log %11 : vector<1x8xf32>
    %cst_14 = arith.constant 4.60517025 : f32
    %13 = vector.broadcast %cst_14 : f32 to vector<1x8xf32>
    %14 = arith.subf %12, %13 : vector<1x8xf32>
    %cst_15 = arith.constant 7.500000e-01 : f32
    %15 = vector.broadcast %cst_15 : f32 to vector<1x8xf32>
    %16 = arith.mulf %15, %14 : vector<1x8xf32>
    %17 = math.exp %16 : vector<1x8xf32>
    %cst_16 = arith.constant 1.000000e+00 : f32
    %18 = vector.broadcast %cst_16 : f32 to vector<1x8xf32>
    %19 = arith.minimumf %17, %18 : vector<1x8xf32>
    %20 = arith.subf %9, %12 : vector<1x8xf32>
    %21 = arith.mulf %19, %20 : vector<1x8xf32>
    %22 = arith.mulf %21, %20 : vector<1x8xf32>
    %23 = tpu.iota {dimensions = array<i32: 1>} : vector<1x8xi32>
    %24 = vector.broadcast %0 : i32 to vector<1x8xi32>
    %25 = arith.addi %24, %23 : vector<1x8xi32>
    %c8_i32_17 = arith.constant 8 : i32
    %26 = vector.broadcast %c8_i32_17 : i32 to vector<1x8xi32>
    %27 = arith.cmpi slt, %25, %26 : vector<1x8xi32>
    %cst_18 = arith.constant 0.000000e+00 : f32
    %28 = vector.broadcast %cst_18 : f32 to vector<1x8xf32>
    %29 = arith.select %27, %22, %28 : vector<1x8xi1>, vector<1x8xf32>
    %30 = vector.shape_cast %29 : vector<1x8xf32> to vector<1x1x8xf32>
    %c0_19 = arith.constant 0 : index
    %c0_20 = arith.constant 0 : index
    %c0_21 = arith.constant 0 : index
    %31 = vector.load %arg6[%c0_19, %c0_20, %c0_21] : memref<1x1x8xf32, #tpu.memory_space<vmem>>, vector<1x1x8xf32>
    tpu.vector_store %arg6[%c0_19, %c0_20, %c0_21], %30 {strides = array<i32>} : memref<1x1x8xf32, #tpu.memory_space<vmem>>, vector<1x1x8xf32>,
    return
  }
  func.func @transform_0(%arg0: i32, %arg1: memref<8xi32, #tpu.memory_space<smem>>, %arg2: memref<8xi32, #tpu.memory_space<smem>>) -> (i32, i32, i32) {
    %c0_i32 = arith.constant 0 : i32
    %c0_i32_0 = arith.constant 0 : i32
    %c0_i32_1 = arith.constant 0 : i32
    return %arg0, %c0_i32, %c0_i32_0 : i32, i32, i32
  }
  func.func @transform_3(%arg0: i32, %arg1: memref<8xi32, #tpu.memory_space<smem>>, %arg2: memref<8xi32, #tpu.memory_space<smem>>) -> (i32, i32, i32) {
    %c0_i32 = arith.constant 0 : i32
    %c0_i32_0 = arith.constant 0 : i32
    %c0_i32_1 = arith.constant 0 : i32
    return %arg0, %c0_i32, %c0_i32_0 : i32, i32, i32
  }
}

</mosaic_0001>

<llo_original>
// kernel: tpu_custom_call.1
$region0: #{tpu_custom_call.1}
  #allocation0 [shape = 'u32[]', space=smem, size = 0x4, offset = 0x4, fixed_abs, tag = 'smem constant byte address 0x4 - core index']
  #allocation1 [shape = 'u32[144,128]{1,0:T(1,128)}', space=vmem, size = 0x12000, scoped, tag = 'internal scratch']
  #allocation2 [shape = 'f32[8,1,128]{2,1,0:T(1,128)}', space=vmem, size = 0x1000, scoped, tag = 'scratch operand']
  #allocation3 [shape = 'f32[8,1,128]{2,1,0:T(1,128)}', space=vmem, size = 0x1000, scoped, tag = 'scratch operand']
  #allocation4 [shape = 's32[16]{0}', space=sflag, size = 0x40, scoped, tag = 'scratch operand']
  #allocation5 [shape = 's32[1]{0}', space=sflag, size = 0x4, scoped, tag = 'scoped memory for tpu_custom_call.1']
  #allocation6 [shape = 'u8[512]{0}', space=smem, size = 0x200, scoped, tag = 'prefetched SMEM operand 0']
  #allocation7 [shape = 'u8[512]{0}', space=smem, size = 0x200, scoped, tag = 'prefetched SMEM operand 1']
  #allocation10 [shape = 's32[]', space=sflag, size = 0x4, offset = 0, fixed_abs, tag = 'sflag constant byte address 0x0 - dummy sync flag']
  #allocation11 [shape = 's32[]', space=sflag, size = 0x4, offset = 0, fixed_abs, tag = 'sflag constant byte address 0x0 - dummy sync flag']
  #allocation12 [shape = 'u32[]', space=smem, size = 0x4, offset = 0x44, fixed_abs, tag = 'smem constant byte address 0x44 - assertion arg 0']
  #allocation13 [shape = 'u32[]', space=smem, size = 0x4, offset = 0x48, fixed_abs, tag = 'smem constant byte address 0x48 - assertion arg 1']
  #allocation14 [shape = 's32[]', space=sflag, size = 0x4, offset = 0, fixed_abs, tag = 'sflag constant byte address 0x0 - dummy sync flag']
  #allocation15 [shape = 's32[]', space=sflag, size = 0x4, offset = 0, fixed_abs, tag = 'sflag constant byte address 0x0 - dummy sync flag']
  %s0 = inlined_call_operand.hbm [shape: s32[8], index: 0, kind: input, shape index: {}]
  %s1 = inlined_call_operand.vmem [shape: s32[8], index: 1, kind: input, shape index: {}]
  %s2 = inlined_call_operand.vmem [shape: f32[1,1,8], index: 2, kind: input, shape index: {}]
  %s3 = inlined_call_operand.hbm [shape: f32[64,1,128], index: 3, kind: input, shape index: {}]
  %s4 = inlined_call_operand.hbm [shape: f32[64,1,128], index: 4, kind: input, shape index: {}]
  %s5 = inlined_call_operand.hbm [shape: f32[1,1,8], index: 5, kind: output, shape index: {}]
  %s6 = sld [smem:[#allocation0]]
  $region36: #{tpu_custom_call.1} parent=0
    _
  %s8 = ssub.s32 1, %s6
  %s9 = scalar_select 0, %s8, %s6
  %11 = dma.hbm_to_smem %s0, 16, [#allocation6], [#allocation5]
  %s12 = sshll.u32 %s1, 4
  %s13 = int_to_ptr.vmem [resolvable:$true] %s12
  %15 = dma.vmem_to_smem %s13, 16, [#allocation7], [#allocation5]
  %16 = dma.done [#allocation5], 32
  %17 = sfence
  $region1: #{tpu_custom_call.1} parent=0
    #allocation8 [shape = 'u8[512]{0}', space=vmem, size = 0x400, scoped, tag = 'output window, operand 0, single buffered']
    #allocation9 [shape = 's32[1]{0}', space=sflag, size = 0x4, scoped, tag = 'scoped memory for tpu_custom_call.1']
    %18 = vsyncpa [#allocation9], 0
    // Predicated region
    $region2: #{tpu_custom_call.1} parent=1 // pred_check
      _
    $region3: #{tpu_custom_call.1} parent=1 // pred_check_branch
      %20 = sbr.rel (0) target = $region5
    $region4: #{tpu_custom_call.1} parent=1 // pred_region
      _
    $region5: #{tpu_custom_call.1} parent=1 // pred_fallthru
      _
    %s21 = smul.u32 0, 8
    loop: start=0, step=1, limit=8
    $region6: #{tpu_custom_call.1} parent=1 // loop_pre_header
      _
    $region7: #{tpu_custom_call.1} parent=1 // loop_header
      %s23 = sphi 0, %s27
      %p24 = scmp.ge.s32.totalorder %s23, 8
    $region8: #{tpu_custom_call.1} parent=1 // loop_header_branch
      %26 = sbr.rel (%p24) target = $region12
    $region9: #{tpu_custom_call.1} parent=1 // loop_body
      %s28 = sadd.s32 %s21, %s23
      %s29 = sld [smem:[#allocation6 + %s28]]
      %s30 = sld [smem:[#allocation7 + %s28]]
      %s31 = smul.addr %s29, 16
      %s32 = scalar_lea.hbm %s3, %s31
      %s33 = scalar_lea.vmem [#allocation2], %s23
      %s34 = scalar_lea.sflag [#allocation4], %s23
      // Predicated region
      $region13: #{tpu_custom_call.1} parent=9 // pred_check
        _
      $region14: #{tpu_custom_call.1} parent=9 // pred_check_branch
        %36 = sbr.rel target = $region16
      $region15: #{tpu_custom_call.1} parent=9 // pred_region
        %37 = sst [smem:[#allocation12]] [#allocation11]
        %38 = sst [smem:[#allocation13]] [#allocation10]
      $region16: #{tpu_custom_call.1} parent=9 // pred_fallthru
        _
      %40 = shalt.err (0)
      %s42 = sshll.u32 %s33, 4
      %s43 = int_to_ptr.vmem [resolvable:$true] %s42
      %45 = dma.hbm_to_vmem [thread:$0]  %s32, 16, %s43, %s34
      %s46 = smul.addr %s30, 16
      %s47 = scalar_lea.hbm %s4, %s46
      %s48 = scalar_lea.vmem [#allocation3], %s23
      %s49 = sadd.s32 %s23, 8
      %s50 = scalar_lea.sflag [#allocation4], %s49
      // Predicated region
      $region17: #{tpu_custom_call.1} parent=9 // pred_check
        _
      $region18: #{tpu_custom_call.1} parent=9 // pred_check_branch
        %52 = sbr.rel target = $region20
      $region19: #{tpu_custom_call.1} parent=9 // pred_region
        %53 = sst [smem:[#allocation12]] [#allocation15]
        %54 = sst [smem:[#allocation13]] [#allocation14]
      $region20: #{tpu_custom_call.1} parent=9 // pred_fallthru
        _
      %56 = shalt.err (0)
      %s58 = sshll.u32 %s48, 4
      %s59 = int_to_ptr.vmem [resolvable:$true] %s58
      %61 = dma.hbm_to_vmem [thread:$0]  %s47, 16, %s59, %s50
    $region10: #{tpu_custom_call.1} parent=1 // loop_footer
      %s27 = sadd.s32 1, %s23
    $region11: #{tpu_custom_call.1} parent=1 // loop_footer_branch
      %22 = sbr.rel target = $region7
    $region12: #{tpu_custom_call.1} parent=1 // loop_exit
      _
    loop: start=0, step=1, limit=8
    $region21: #{tpu_custom_call.1} parent=1 // loop_pre_header
      _
    $region22: #{tpu_custom_call.1} parent=1 // loop_header
      %s63 = sphi 0, %s67
      %p64 = scmp.ge.s32.totalorder %s63, 8
    $region23: #{tpu_custom_call.1} parent=1 // loop_header_branch
      %66 = sbr.rel (%p64) target = $region27
    $region24: #{tpu_custom_call.1} parent=1 // loop_body
      %s68 = scalar_lea.sflag [#allocation4], %s63
      %s69 = smul.u32 1, 1
      %s70 = sshll.u32 %s69, 4
      %71 = dma.done %s68, %s70
      %s72 = sadd.s32 %s63, 8
      %s73 = scalar_lea.sflag [#allocation4], %s72
      %s74 = sshll.u32 %s69, 4
      %75 = dma.done %s73, %s74
    $region25: #{tpu_custom_call.1} parent=1 // loop_footer
      %s67 = sadd.s32 1, %s63
    $region26: #{tpu_custom_call.1} parent=1 // loop_footer_branch
      %62 = sbr.rel target = $region22
    $region27: #{tpu_custom_call.1} parent=1 // loop_exit
      _
    %v76 = vld [vmem:[#allocation2] sm:$0x1]
    %v77 = vld [vmem:[#allocation2 + $0x1] sm:$0x1]
    %v78 = vld [vmem:[#allocation2 + $0x2] sm:$0x1]
    %v79 = vld [vmem:[#allocation2 + $0x3] sm:$0x1]
    %v80 = vld [vmem:[#allocation2 + $0x4] sm:$0x1]
    %v81 = vld [vmem:[#allocation2 + $0x5] sm:$0x1]
    %v82 = vld [vmem:[#allocation2 + $0x6] sm:$0x1]
    %v83 = vld [vmem:[#allocation2 + $0x7] sm:$0x1]
    %v84 = vld [vmem:[#allocation3] sm:$0x1]
    %v85 = vld [vmem:[#allocation3 + $0x1] sm:$0x1]
    %v86 = vld [vmem:[#allocation3 + $0x2] sm:$0x1]
    %v87 = vld [vmem:[#allocation3 + $0x3] sm:$0x1]
    %v88 = vld [vmem:[#allocation3 + $0x4] sm:$0x1]
    %v89 = vld [vmem:[#allocation3 + $0x5] sm:$0x1]
    %v90 = vld [vmem:[#allocation3 + $0x6] sm:$0x1]
    %v91 = vld [vmem:[#allocation3 + $0x7] sm:$0x1]
    %v92 = vmul.f32 %v76, %v84
    %v93 = vmul.f32 %v77, %v85
    %v94 = vmul.f32 %v78, %v86
    %v95 = vmul.f32 %v79, %v87
    %v96 = vmul.f32 %v80, %v88
    %v97 = vmul.f32 %v81, %v89
    %v98 = vmul.f32 %v82, %v90
    %v99 = vmul.f32 %v83, %v91
    %v108 = vcombine.low %v92, %v93
    %v109 = vcombine.low %v94, %v95
    %v110 = vcombine.low %v96, %v97
    %v111 = vcombine.low %v98, %v99
    %v113 = vunpack.c.l.s4 1966171168
    %v114 = vunpack.c.0.s8 %v113
    %v115 = vlaneseq
    %v116 = vshrl.u32 %v115, 7
    %v117 = vsub.s32 %v114, %v116
    %v118 = vrot.slane %v108, %v117
    %v120 = vunpack.c.l.s4 1966171168
    %v121 = vunpack.c.0.s8 %v120
    %v122 = vlaneseq
    %v123 = vshrl.u32 %v122, 7
    %v124 = vsub.s32 %v121, %v123
    %v125 = vrot.slane %v109, %v124
    %v127 = vunpack.c.l.s4 1966171168
    %v128 = vunpack.c.0.s8 %v127
    %v129 = vlaneseq
    %v130 = vshrl.u32 %v129, 7
    %v131 = vsub.s32 %v128, %v130
    %v132 = vrot.slane %v110, %v131
    %v134 = vunpack.c.l.s4 1966171168
    %v135 = vunpack.c.0.s8 %v134
    %v136 = vlaneseq
    %v137 = vshrl.u32 %v136, 7
    %v138 = vsub.s32 %v135, %v137
    %v139 = vrot.slane %v111, %v138
    %v140 = vcombine.low %v118, %v125
    %v141 = vcombine.low %v132, %v139
    %v143 = vunpack.c.l.s4 1966171168
    %v144 = vunpack.c.0.s8 %v143
    %v145 = vlaneseq
    %v146 = vshrl.u32 %v145, 7
    %v147 = vsub.s32 %v144, %v146
    %v148 = vrot.slane %v140, %v147
    %v150 = vunpack.c.l.s4 1966171168
    %v151 = vunpack.c.0.s8 %v150
    %v152 = vlaneseq
    %v153 = vshrl.u32 %v152, 7
    %v154 = vsub.s32 %v151, %v153
    %v155 = vrot.slane %v141, %v154
    %v156 = vcombine.low %v148, %v155
    %158 = vadd.xlane.f32.xlu0 %v156
    %v159 = vpop.xlane.xlu0 %158
    %v160 = vld [vmem:[%s2] sm:$0x1]
    %v161 = vlog2.pop %v160
    %v162 = vmul.f32 %v161, 0.6931472
    %v163 = vsub.f32 %v162, 4.6051702
    %v164 = vmul.f32 %v163, 0.75
    %v165 = vmul.f32 %v164, 1.442695
    %v166 = vpow.pop %v165
    %v167 = vmin.f32 %v166, 1.0
    %v169 = vlaneseq
    %v170 = vshrl.u32 %v169, 7
    %v171 = vsub.s32 0, %v170
    %v172 = vrot.slane %v162, %v171
    %174 = vbcast.lane.b32.xlu0 %v172, 256
    %v175 = vpop.permute.xlu0 %174
    %v177 = vsub.f32 %v159, %v175
    %v179 = vcombine.high %v177, %v177
    %v181 = vunpack.c.l.s4 1966171168
    %v182 = vunpack.c.0.s8 %v181
    %v183 = vlaneseq
    %v184 = vshrl.u32 %v183, 7
    %v185 = vsub.s32 %v182, %v184
    %v186 = vrot.slane %v177, %v185
    %v188 = vunpack.c.l.s4 1966171168
    %v189 = vunpack.c.0.s8 %v188
    %v190 = vlaneseq
    %v191 = vshrl.u32 %v190, 7
    %v192 = vsub.s32 %v189, %v191
    %v193 = vrot.slane %v179, %v192
    %v194 = vcombine.high %v186, %v186
    %v195 = vcombine.high %v193, %v193
    %v197 = vunpack.c.l.s4 1966171168
    %v198 = vunpack.c.0.s8 %v197
    %v199 = vlaneseq
    %v200 = vshrl.u32 %v199, 7
    %v201 = vsub.s32 %v198, %v200
    %v202 = vrot.slane %v186, %v201
    %v204 = vunpack.c.l.s4 1966171168
    %v205 = vunpack.c.0.s8 %v204
    %v206 = vlaneseq
    %v207 = vshrl.u32 %v206, 7
    %v208 = vsub.s32 %v205, %v207
    %v209 = vrot.slane %v193, %v208
    %v211 = vunpack.c.l.s4 1966171168
    %v212 = vunpack.c.0.s8 %v211
    %v213 = vlaneseq
    %v214 = vshrl.u32 %v213, 7
    %v215 = vsub.s32 %v212, %v214
    %v216 = vrot.slane %v194, %v215
    %v218 = vunpack.c.l.s4 1966171168
    %v219 = vunpack.c.0.s8 %v218
    %v220 = vlaneseq
    %v221 = vshrl.u32 %v220, 7
    %v222 = vsub.s32 %v219, %v221
    %v223 = vrot.slane %v195, %v222
    %v224 = vcombine.high %v202, %v202
    %v225 = vcombine.high %v209, %v209
    %v226 = vcombine.high %v216, %v216
    %v227 = vcombine.high %v223, %v223
    %v228 = vcombine.low %v202, %v216
    %v229 = vcombine.low %v224, %v226
    %v230 = vcombine.low %v209, %v223
    %v231 = vcombine.low %v225, %v227
    %v233 = vunpack.c.l.s4 1966171168
    %v234 = vunpack.c.0.s8 %v233
    %v235 = vlaneseq
    %v236 = vshrl.u32 %v235, 7
    %v237 = vsub.s32 %v234, %v236
    %v238 = vrot.slane %v228, %v237
    %v240 = vunpack.c.l.s4 1966171168
    %v241 = vunpack.c.0.s8 %v240
    %v242 = vlaneseq
    %v243 = vshrl.u32 %v242, 7
    %v244 = vsub.s32 %v241, %v243
    %v245 = vrot.slane %v229, %v244
    %v247 = vunpack.c.l.s4 1966171168
    %v248 = vunpack.c.0.s8 %v247
    %v249 = vlaneseq
    %v250 = vshrl.u32 %v249, 7
    %v251 = vsub.s32 %v248, %v250
    %v252 = vrot.slane %v230, %v251
    %v254 = vunpack.c.l.s4 1966171168
    %v255 = vunpack.c.0.s8 %v254
    %v256 = vlaneseq
    %v257 = vshrl.u32 %v256, 7
    %v258 = vsub.s32 %v255, %v257
    %v259 = vrot.slane %v231, %v258
    %v260 = vcombine.low %v238, %v245
    %v261 = vcombine.low %v252, %v259
    %v263 = vunpack.c.l.s4 1966171168
    %v264 = vunpack.c.0.s8 %v263
    %v265 = vlaneseq
    %v266 = vshrl.u32 %v265, 7
    %v267 = vsub.s32 %v264, %v266
    %v268 = vrot.slane %v260, %v267
    %v270 = vunpack.c.l.s4 1966171168
    %v271 = vunpack.c.0.s8 %v270
    %v272 = vlaneseq
    %v273 = vshrl.u32 %v272, 7
    %v274 = vsub.s32 %v271, %v273
    %v275 = vrot.slane %v261, %v274
    %v276 = vcombine.low %v268, %v275
    %277 = vset.pattern.permute.xlu0 0
    %278 = vperm.xlu0 %277, %v276
    %v279 = vpop.permute.xlu0 %278
    %v280 = vlaneseq
    %v281 = vand.u32 %v280, 127
    %v282 = vlaneseq
    %v283 = vshrl.u32 %v282, 7
    %v284 = vsub.s32 %v281, %v283
    %v285 = vrot.slane %v279, %v284
    %v287 = vunpack.c.l.s4 1966171168
    %v288 = vunpack.c.0.s8 %v287
    %v289 = vlaneseq
    %v290 = vshrl.u32 %v289, 7
    %v291 = vsub.s32 %v288, %v290
    %v292 = vrot.slane %v285, %v291
    %v294 = vunpack.c.l.s4 1966171168
    %v295 = vunpack.c.0.s8 %v294
    %v296 = vlaneseq
    %v297 = vshrl.u32 %v296, 7
    %v298 = vsub.s32 %v295, %v297
    %v299 = vrot.slane %v292, %v298
    %v301 = vmul.f32 %v167, %v299
    %302 = vset.pattern.permute.xlu0 0
    %303 = vperm.xlu0 %302, %v276
    %v304 = vpop.permute.xlu0 %303
    %v305 = vlaneseq
    %v306 = vshrl.u32 %v305, 7
    %v307 = vsub.s32 %v281, %v306
    %v308 = vrot.slane %v304, %v307
    %v310 = vunpack.c.l.s4 1966171168
    %v311 = vunpack.c.0.s8 %v310
    %v312 = vlaneseq
    %v313 = vshrl.u32 %v312, 7
    %v314 = vsub.s32 %v311, %v313
    %v315 = vrot.slane %v308, %v314
    %v317 = vunpack.c.l.s4 1966171168
    %v318 = vunpack.c.0.s8 %v317
    %v319 = vlaneseq
    %v320 = vshrl.u32 %v319, 7
    %v321 = vsub.s32 %v318, %v320
    %v322 = vrot.slane %v315, %v321
    %v324 = vmul.f32 %v301, %v322
    %v325 = vstv %s21
    %v326 = vadd.s32 %v325, %v281
    %vm327 = vcmp.lt.s32.totalorder %v326, 8
    %v328 = vsel %vm327, %v324, 0.0
    %vm329 = vcmask 57344
    %330 = vst.msk [vmem:[#allocation8] sm:$0x1] %vm329, %v328
    // Predicated region
    $region28: #{tpu_custom_call.1} parent=1 // pred_check
      _
    $region29: #{tpu_custom_call.1} parent=1 // pred_check_branch
      %332 = sbr.rel (0) target = $region31
    $region30: #{tpu_custom_call.1} parent=1 // pred_region
      %s334 = ssub.s32 16, 16
      %335 = vsyncadd [#allocation9], %s334
      %s337 = sshll.u32 [#allocation8], 4
      %s338 = int_to_ptr.vmem [resolvable:$true] %s337
      %340 = dma.vmem_to_hbm [thread:$0]  %s338, 16, %s5, [#allocation9]
    $region31: #{tpu_custom_call.1} parent=1 // pred_fallthru
      _
    // Predicated region
    $region32: #{tpu_custom_call.1} parent=1 // pred_check
      _
    $region33: #{tpu_custom_call.1} parent=1 // pred_check_branch
      %342 = sbr.rel (0) target = $region35
    $region34: #{tpu_custom_call.1} parent=1 // pred_region
      %343 = dma.done [#allocation9], 16
    $region35: #{tpu_custom_call.1} parent=1 // pred_fallthru
      _
    %344 = vsyncpa [#allocation9], 1
  %345 = vsyncmov [#allocation4]
  %s346 = vpop.sfrf %345
  %p347 = scmp.eq.s32.totalorder %s346, 0
  %p348 = pneg %p347
  %350 = shalt.err (%p348)
  %s351 = scalar_lea.sflag [#allocation4], 1
  %352 = vsyncmov %s351
  %s353 = vpop.sfrf %352
  %p354 = scmp.eq.s32.totalorder %s353, 0
  %p355 = pneg %p354
  %357 = shalt.err (%p355)
  %s358 = scalar_lea.sflag [#allocation4], 2
  %359 = vsyncmov %s358
  %s360 = vpop.sfrf %359
  %p361 = scmp.eq.s32.totalorder %s360, 0
  %p362 = pneg %p361
  %364 = shalt.err (%p362)
  %s365 = scalar_lea.sflag [#allocation4], 3
  %366 = vsyncmov %s365
  %s367 = vpop.sfrf %366
  %p368 = scmp.eq.s32.totalorder %s367, 0
  %p369 = pneg %p368
  %371 = shalt.err (%p369)
  %s372 = scalar_lea.sflag [#allocation4], 4
  %373 = vsyncmov %s372
  %s374 = vpop.sfrf %373
  %p375 = scmp.eq.s32.totalorder %s374, 0
  %p376 = pneg %p375
  %378 = shalt.err (%p376)
  %s379 = scalar_lea.sflag [#allocation4], 5
  %380 = vsyncmov %s379
  %s381 = vpop.sfrf %380
  %p382 = scmp.eq.s32.totalorder %s381, 0
  %p383 = pneg %p382
  %385 = shalt.err (%p383)
  %s386 = scalar_lea.sflag [#allocation4], 6
  %387 = vsyncmov %s386
  %s388 = vpop.sfrf %387
  %p389 = scmp.eq.s32.totalorder %s388, 0
  %p390 = pneg %p389
  %392 = shalt.err (%p390)
  %s393 = scalar_lea.sflag [#allocation4], 7
  %394 = vsyncmov %s393
  %s395 = vpop.sfrf %394
  %p396 = scmp.eq.s32.totalorder %s395, 0
  %p397 = pneg %p396
  %399 = shalt.err (%p397)
  %s400 = scalar_lea.sflag [#allocation4], 8
  %401 = vsyncmov %s400
  %s402 = vpop.sfrf %401
  %p403 = scmp.eq.s32.totalorder %s402, 0
  %p404 = pneg %p403
  %406 = shalt.err (%p404)
  %s407 = scalar_lea.sflag [#allocation4], 9
  %408 = vsyncmov %s407
  %s409 = vpop.sfrf %408
  %p410 = scmp.eq.s32.totalorder %s409, 0
  %p411 = pneg %p410
  %413 = shalt.err (%p411)
  %s414 = scalar_lea.sflag [#allocation4], 10
  %415 = vsyncmov %s414
  %s416 = vpop.sfrf %415
  %p417 = scmp.eq.s32.totalorder %s416, 0
  %p418 = pneg %p417
  %420 = shalt.err (%p418)
  %s421 = scalar_lea.sflag [#allocation4], 11
  %422 = vsyncmov %s421
  %s423 = vpop.sfrf %422
  %p424 = scmp.eq.s32.totalorder %s423, 0
  %p425 = pneg %p424
  %427 = shalt.err (%p425)
  %s428 = scalar_lea.sflag [#allocation4], 12
  %429 = vsyncmov %s428
  %s430 = vpop.sfrf %429
  %p431 = scmp.eq.s32.totalorder %s430, 0
  %p432 = pneg %p431
  %434 = shalt.err (%p432)
  %s435 = scalar_lea.sflag [#allocation4], 13
  %436 = vsyncmov %s435
  %s437 = vpop.sfrf %436
  %p438 = scmp.eq.s32.totalorder %s437, 0
  %p439 = pneg %p438
  %441 = shalt.err (%p439)
  %s442 = scalar_lea.sflag [#allocation4], 14
  %443 = vsyncmov %s442
  %s444 = vpop.sfrf %443
  %p445 = scmp.eq.s32.totalorder %s444, 0
  %p446 = pneg %p445
  %448 = shalt.err (%p446)
  %s449 = scalar_lea.sflag [#allocation4], 15
  %450 = vsyncmov %s449
  %s451 = vpop.sfrf %450
  %p452 = scmp.eq.s32.totalorder %s451, 0
  %p453 = pneg %p452
  %455 = shalt.err (%p453)

</llo_original>
